<compile_context>
chip_gen: v7x
topology: tpu7x:2x2x1
jax: 0.10.0
libtpu: 0.0.40
codegen_flags: <defaults>
</compile_context>

<pallas_src>
import functools

import jax
import jax.numpy as jnp
import numpy as np
from jax.experimental import pallas as pl
from jax.experimental.pallas import tpu as pltpu


def _softplus(x):
    # Numerically stable, single-branch log(1 + exp(x)):
    #   softplus(x) = max(x, 0) + log1p(exp(-|x|))
    return jnp.maximum(x, 0.0) + jnp.log1p(jnp.exp(-jnp.abs(x)))


def _gating_kernel(x_ref, w_ref, b_ref, noise_ref, out_ref, *, top_k, n_experts):
    x = x_ref[...]                                             # (TM, D) f32
    # Single fused matmul on the MXU: [gate | noise_logits] in one pass.
    y = jnp.dot(x, w_ref[...], preferred_element_type=jnp.float32) + b_ref[...]
    gate = y[:, :n_experts]                                    # (TM, E)
    nlog = y[:, n_experts:]                                    # (TM, E)
    h = gate + noise_ref[...] * _softplus(nlog)                # (TM, E)

    lane = jax.lax.broadcasted_iota(jnp.int32, h.shape, dimension=1)

    # Exact top-k selection (first occurrence wins on ties, matching torch.topk).
    work = h
    mask = jnp.zeros(h.shape, dtype=jnp.bool_)
    for _ in range(top_k):                                     # static unrolled loop
        m = jnp.max(work, axis=-1, keepdims=True)
        is_max = work == m
        first_idx = jnp.min(jnp.where(is_max, lane, n_experts),
                            axis=-1, keepdims=True)
        sel = lane == first_idx
        mask = jnp.logical_or(mask, sel)
        work = jnp.where(sel, -jnp.inf, work)

    # Softmax with non-top-k entries forced to -inf (-> probability 0).
    g = jnp.where(mask, h, -jnp.inf)
    g = g - jnp.max(g, axis=-1, keepdims=True)
    e = jnp.exp(g)
    out_ref[...] = (e / jnp.sum(e, axis=-1, keepdims=True)).astype(out_ref.dtype)


def noisy_topk_gating(x, wg, bg, wn, bn, noise, *, top_k, token_tile=512):
    """x: (B, T, D) f32; wg/wn: (D, E); bg/bn: (E,); noise: (B, T, E) ~ N(0,1)."""
    B, T, D = x.shape
    E = wg.shape[1]
    N = B * T

    x2 = x.reshape(N, D)
    noise2 = noise.reshape(N, E)

    # Fuse the two projections into one (D, 2E) weight and (1, 2E) bias.
    w_cat = jnp.concatenate([wg, wn], axis=1)                  # (D, 2E)
    b_cat = jnp.concatenate([bg, bn]).reshape(1, 2 * E)        # (1, 2E)

    # Effective tile: a multiple of 8 rows, no larger than the (padded) token
    # count; then pad tokens up to a multiple of the tile (tail rows dropped).
    n_pad8 = ((N + 7) // 8) * 8
    tm = max(8, min(token_tile, n_pad8) // 8 * 8)
    n_padded = ((N + tm - 1) // tm) * tm
    if n_padded != N:
        x2 = jnp.pad(x2, ((0, n_padded - N), (0, 0)))
        noise2 = jnp.pad(noise2, ((0, n_padded - N), (0, 0)))

    grid = (n_padded // tm,)
    out = pl.pallas_call(
        functools.partial(_gating_kernel, top_k=top_k, n_experts=E),
        out_shape=jax.ShapeDtypeStruct((n_padded, E), x.dtype),
        grid_spec=pltpu.PrefetchScalarGridSpec(
            num_scalar_prefetch=0,
            grid=grid,
            in_specs=[
                pl.BlockSpec((tm, D), lambda i: (i, 0)),        # x tile
                pl.BlockSpec((D, 2 * E), lambda i: (0, 0)),     # fused Wg||Wn
                pl.BlockSpec((1, 2 * E), lambda i: (0, 0)),     # fused bg||bn
                pl.BlockSpec((tm, E), lambda i: (i, 0)),        # noise tile
            ],
            out_specs=pl.BlockSpec((tm, E), lambda i: (i, 0)),
        ),
        compiler_params=pltpu.CompilerParams(
            dimension_semantics=("parallel",)),
    )(x2, w_cat, b_cat, noise2)
    return out[:N].reshape(B, T, E)


def _reference(x, wg, bg, wn, bn, noise, top_k):
    gate = x @ wg + bg
    nlog = x @ wn + bn
    h = gate + noise * jax.nn.softplus(nlog)
    _, idxs = jax.lax.top_k(h, top_k)
    onehot = jax.nn.one_hot(idxs, h.shape[-1], dtype=bool).any(axis=-2)
    g = jnp.where(onehot, h, -jnp.inf)
    return jax.nn.softmax(g, axis=-1)


if __name__ == "__main__":
    key = jax.random.PRNGKey(0)
    B, T, n_embed, n_experts, top_k = 2, 8, 32, 8, 2

    k_x, k_wg, k_bg, k_wn, k_bn, k_noise = jax.random.split(key, 6)
    # Deterministic parameter init (PyTorch nn.Linear-style uniform bounds).
    bound = 1.0 / np.sqrt(n_embed)
    x = jax.random.normal(k_x, (B, T, n_embed), dtype=jnp.float32)
    wg = jax.random.uniform(k_wg, (n_embed, n_experts), jnp.float32, -bound, bound)
    bg = jax.random.uniform(k_bg, (n_experts,), jnp.float32, -bound, bound)
    wn = jax.random.uniform(k_wn, (n_embed, n_experts), jnp.float32, -bound, bound)
    bn = jax.random.uniform(k_bn, (n_experts,), jnp.float32, -bound, bound)
    # torch.randn_like(noise) -> standard normal, generated here deterministically
    # and passed in explicitly so the kernel is a pure function.
    noise = jax.random.normal(k_noise, (B, T, n_experts), dtype=jnp.float32)

    g = noisy_topk_gating(x, wg, bg, wn, bn, noise, top_k=top_k)
    g = jax.block_until_ready(g)

    g_ref = _reference(x, wg, bg, wn, bn, noise, top_k)
    np.testing.assert_allclose(np.asarray(g), np.asarray(g_ref), rtol=1e-5, atol=1e-5)
    assert g.shape == (B, T, n_experts)

    print("KERNEL_OK")
</pallas_src>

<mosaic_0001>
module attributes {stable_mosaic.version = 11 : i64} {
  func.func @_gating_kernel(%arg0: i32, %arg1: memref<16x32xf32, #tpu.memory_space<vmem>>, %arg2: memref<32x16xf32, #tpu.memory_space<vmem>>, %arg3: memref<1x16xf32, #tpu.memory_space<vmem>>, %arg4: memref<16x8xf32, #tpu.memory_space<vmem>>, %arg5: memref<16x8xf32, #tpu.memory_space<vmem>>) attributes {dimension_semantics = [#tpu.dimension_semantics<parallel>], iteration_bounds = array<i64: 1>, scalar_prefetch = 0 : i64, scratch_operands = 0 : i64, tpu.core_type = #tpu.core_type<tc>, window_params = [{transform_indices = @transform_0, window_bounds = array<i64: 16, 32>}, {pipeline_mode = #tpu.pipeline_mode<synchronous>, transform_indices = @transform_1, window_bounds = array<i64: 32, 16>}, {pipeline_mode = #tpu.pipeline_mode<synchronous>, transform_indices = @transform_2, window_bounds = array<i64: 1, 16>}, {transform_indices = @transform_3, window_bounds = array<i64: 16, 8>}, {transform_indices = @transform_4, window_bounds = array<i64: 16, 8>}]} {
    %c0 = arith.constant 0 : index
    %c0_0 = arith.constant 0 : index
    %0 = vector.load %arg1[%c0, %c0_0] : memref<16x32xf32, #tpu.memory_space<vmem>>, vector<16x32xf32>
    %c0_1 = arith.constant 0 : index
    %c0_2 = arith.constant 0 : index
    %1 = vector.load %arg2[%c0_1, %c0_2] : memref<32x16xf32, #tpu.memory_space<vmem>>, vector<32x16xf32>
    %cst = arith.constant dense<0.000000e+00> : vector<16x16xf32>
    %2 = tpu.matmul %0, %1, %cst {dimension_numbers = #tpu.dot_dimension_numbers<[1], [0], [0], [1], [0, 0, 1, 1], [], []>} : vector<16x32xf32>, vector<32x16xf32>, vector<16x16xf32> -> vector<16x16xf32>
    %c0_3 = arith.constant 0 : index
    %c0_4 = arith.constant 0 : index
    %3 = vector.load %arg3[%c0_3, %c0_4] : memref<1x16xf32, #tpu.memory_space<vmem>>, vector<1x16xf32>
    %4 = vector.broadcast %3 : vector<1x16xf32> to vector<16x16xf32>
    %5 = arith.addf %2, %4 : vector<16x16xf32>
    %6 = vector.extract_strided_slice %5 {offsets = [0, 0], sizes = [16, 8], strides = [1, 1]} : vector<16x16xf32> to vector<16x8xf32>
    %7 = vector.extract_strided_slice %5 {offsets = [0, 8], sizes = [16, 8], strides = [1, 1]} : vector<16x16xf32> to vector<16x8xf32>
    %c0_5 = arith.constant 0 : index
    %c0_6 = arith.constant 0 : index
    %8 = vector.load %arg4[%c0_5, %c0_6] : memref<16x8xf32, #tpu.memory_space<vmem>>, vector<16x8xf32>
    %cst_7 = arith.constant 0.000000e+00 : f32
    %9 = vector.broadcast %cst_7 : f32 to vector<16x8xf32>
    %10 = arith.maximumf %7, %9 : vector<16x8xf32>
    %11 = math.absf %7 : vector<16x8xf32>
    %cst_8 = arith.constant 0.000000e+00 : f32
    %12 = vector.broadcast %cst_8 : f32 to vector<16x8xf32>
    %13 = arith.subf %12, %11 : vector<16x8xf32>
    %14 = math.exp %13 : vector<16x8xf32>
    %15 = math.log1p %14 : vector<16x8xf32>
    %16 = arith.addf %10, %15 : vector<16x8xf32>
    %17 = arith.mulf %8, %16 : vector<16x8xf32>
    %18 = arith.addf %6, %17 : vector<16x8xf32>
    %19 = tpu.iota {dimensions = array<i32: 1>} : vector<16x8xi32>
    %false = arith.constant false
    %20 = vector.broadcast %false : i1 to vector<16x8xi1>
    %cst_9 = arith.constant dense<0xFF800000> : vector<16xf32>
    %21 = vector.multi_reduction <maximumf>, %18, %cst_9 [1] : vector<16x8xf32> to vector<16xf32>
    %22 = vector.shape_cast %21 : vector<16xf32> to vector<16x1xf32>
    %23 = vector.broadcast %22 : vector<16x1xf32> to vector<16x8xf32>
    %24 = arith.cmpf oeq, %18, %23 : vector<16x8xf32>
    %c8_i32 = arith.constant 8 : i32
    %25 = vector.broadcast %c8_i32 : i32 to vector<16x8xi32>
    %26 = arith.select %24, %19, %25 : vector<16x8xi1>, vector<16x8xi32>
    %cst_10 = arith.constant dense<2147483647> : vector<16xi32>
    %27 = vector.multi_reduction <minsi>, %26, %cst_10 [1] : vector<16x8xi32> to vector<16xi32>
    %28 = vector.shape_cast %27 : vector<16xi32> to vector<16x1xi32>
    %29 = vector.broadcast %28 : vector<16x1xi32> to vector<16x8xi32>
    %30 = arith.cmpi eq, %19, %29 : vector<16x8xi32>
    %31 = arith.ori %20, %30 : vector<16x8xi1>
    %cst_11 = arith.constant 0xFF800000 : f32
    %32 = vector.broadcast %cst_11 : f32 to vector<16x8xf32>
    %33 = arith.select %30, %32, %18 : vector<16x8xi1>, vector<16x8xf32>
    %cst_12 = arith.constant dense<0xFF800000> : vector<16xf32>
    %34 = vector.multi_reduction <maximumf>, %33, %cst_12 [1] : vector<16x8xf32> to vector<16xf32>
    %35 = vector.shape_cast %34 : vector<16xf32> to vector<16x1xf32>
    %36 = vector.broadcast %35 : vector<16x1xf32> to vector<16x8xf32>
    %37 = arith.cmpf oeq, %33, %36 : vector<16x8xf32>
    %c8_i32_13 = arith.constant 8 : i32
    %38 = vector.broadcast %c8_i32_13 : i32 to vector<16x8xi32>
    %39 = arith.select %37, %19, %38 : vector<16x8xi1>, vector<16x8xi32>
    %cst_14 = arith.constant dense<2147483647> : vector<16xi32>
    %40 = vector.multi_reduction <minsi>, %39, %cst_14 [1] : vector<16x8xi32> to vector<16xi32>
    %41 = vector.shape_cast %40 : vector<16xi32> to vector<16x1xi32>
    %42 = vector.broadcast %41 : vector<16x1xi32> to vector<16x8xi32>
    %43 = arith.cmpi eq, %19, %42 : vector<16x8xi32>
    %44 = arith.ori %31, %43 : vector<16x8xi1>
    %cst_15 = arith.constant 0xFF800000 : f32
    %45 = vector.broadcast %cst_15 : f32 to vector<16x8xf32>
    %46 = arith.select %44, %18, %45 : vector<16x8xi1>, vector<16x8xf32>
    %cst_16 = arith.constant dense<0xFF800000> : vector<16xf32>
    %47 = vector.multi_reduction <maximumf>, %46, %cst_16 [1] : vector<16x8xf32> to vector<16xf32>
    %48 = vector.shape_cast %47 : vector<16xf32> to vector<16x1xf32>
    %49 = vector.broadcast %48 : vector<16x1xf32> to vector<16x8xf32>
    %50 = arith.subf %46, %49 : vector<16x8xf32>
    %51 = math.exp %50 : vector<16x8xf32>
    %cst_17 = arith.constant dense<0.000000e+00> : vector<16xf32>
    %52 = vector.multi_reduction <add>, %51, %cst_17 [1] : vector<16x8xf32> to vector<16xf32>
    %53 = vector.shape_cast %52 : vector<16xf32> to vector<16x1xf32>
    %54 = vector.broadcast %53 : vector<16x1xf32> to vector<16x8xf32>
    %55 = arith.divf %51, %54 : vector<16x8xf32>
    %c0_18 = arith.constant 0 : index
    %c0_19 = arith.constant 0 : index
    %56 = vector.load %arg5[%c0_18, %c0_19] : memref<16x8xf32, #tpu.memory_space<vmem>>, vector<16x8xf32>
    tpu.vector_store %arg5[%c0_18, %c0_19], %55 {strides = array<i32>} : memref<16x8xf32, #tpu.memory_space<vmem>>, vector<16x8xf32>,
    return
  }
  func.func @transform_0(%arg0: i32) -> (i32, i32) {
    %c0_i32 = arith.constant 0 : i32
    %c0_i32_0 = arith.constant 0 : i32
    return %arg0, %c0_i32 : i32, i32
  }
  func.func @transform_1(%arg0: i32) -> (i32, i32) {
    %c0_i32 = arith.constant 0 : i32
    %c0_i32_0 = arith.constant 0 : i32
    %c0_i32_1 = arith.constant 0 : i32
    return %c0_i32, %c0_i32_0 : i32, i32
  }
  func.func @transform_2(%arg0: i32) -> (i32, i32) {
    %c0_i32 = arith.constant 0 : i32
    %c0_i32_0 = arith.constant 0 : i32
    %c0_i32_1 = arith.constant 0 : i32
    return %c0_i32, %c0_i32_0 : i32, i32
  }
  func.func @transform_3(%arg0: i32) -> (i32, i32) {
    %c0_i32 = arith.constant 0 : i32
    %c0_i32_0 = arith.constant 0 : i32
    return %arg0, %c0_i32 : i32, i32
  }
  func.func @transform_4(%arg0: i32) -> (i32, i32) {
    %c0_i32 = arith.constant 0 : i32
    %c0_i32_0 = arith.constant 0 : i32
    return %arg0, %c0_i32 : i32, i32
  }
}

</mosaic_0001>

<llo_original>
// kernel: tpu_custom_call.1
$region0: #{tpu_custom_call.1}
  #allocation0 [shape = 'u32[]', space=smem, size = 0x4, offset = 0x4, fixed_abs, tag = 'smem constant byte address 0x4 - core index']
  #allocation1 [shape = 'u32[144,128]{1,0:T(1,128)}', space=vmem, size = 0x12000, scoped, tag = 'internal scratch']
  %s0 = inlined_call_operand.vmem [shape: f32[16,32], index: 0, kind: input, shape index: {}]
  %s1 = inlined_call_operand.vmem [shape: f32[32,16], index: 1, kind: input, shape index: {}]
  %s2 = inlined_call_operand.vmem [shape: f32[1,16], index: 2, kind: input, shape index: {}]
  %s3 = inlined_call_operand.vmem [shape: f32[16,8], index: 3, kind: input, shape index: {}]
  %s4 = inlined_call_operand.vmem [shape: f32[16,8], index: 4, kind: output, shape index: {}]
  %s5 = sld [smem:[#allocation0]]
  $region26: #{tpu_custom_call.1} parent=0
    _
  %s7 = ssub.s32 1, %s5
  %s8 = scalar_select 0, %s7, %s5
  // Predicated region
  $region2: #{tpu_custom_call.1} parent=0 // pred_check
    _
  $region3: #{tpu_custom_call.1} parent=0 // pred_check_branch
    %10 = sbr.rel (0) target = $region5
  $region4: #{tpu_custom_call.1} parent=0 // pred_region
    _
  $region5: #{tpu_custom_call.1} parent=0 // pred_fallthru
    _
  // Predicated region
  $region6: #{tpu_custom_call.1} parent=0 // pred_check
    _
  $region7: #{tpu_custom_call.1} parent=0 // pred_check_branch
    %12 = sbr.rel (0) target = $region9
  $region8: #{tpu_custom_call.1} parent=0 // pred_region
    _
  $region9: #{tpu_custom_call.1} parent=0 // pred_fallthru
    _
  // Predicated region
  $region10: #{tpu_custom_call.1} parent=0 // pred_check
    _
  $region11: #{tpu_custom_call.1} parent=0 // pred_check_branch
    %14 = sbr.rel (0) target = $region13
  $region12: #{tpu_custom_call.1} parent=0 // pred_region
    _
  $region13: #{tpu_custom_call.1} parent=0 // pred_fallthru
    _
  // Predicated region
  $region14: #{tpu_custom_call.1} parent=0 // pred_check
    _
  $region15: #{tpu_custom_call.1} parent=0 // pred_check_branch
    %16 = sbr.rel (0) target = $region17
  $region16: #{tpu_custom_call.1} parent=0 // pred_region
    _
  $region17: #{tpu_custom_call.1} parent=0 // pred_fallthru
    _
  %v17 = vld [vmem:[%s0] sm:$0xff]
  %v18 = vld [vmem:[%s0 + $0x8] sm:$0xff]
  %v19 = vld [vmem:[%s1] sm:$0xff]
  %v20 = vld [vmem:[%s1 + $0x8] sm:$0xff]
  %v21 = vld [vmem:[%s1 + $0x10] sm:$0xff]
  %v22 = vld [vmem:[%s1 + $0x18] sm:$0xff]
  %v23 = vld [vmem:[%s2] sm:$0x1]
  %v25 = vlaneseq
  %v26 = vshrl.u32 %v25, 7
  %v27 = vsub.s32 0, %v26
  %v28 = vrot.slane %v23, %v27
  %vm30 = vcmask 261120
  %v32 = vsel %vm30, %v17, 0
  %v35 = vsel %vm30, %v18, 0
  %37 = vmatprep.subr.mxu0 0.0
  %38 = vmatpush1.msra.mxu0 %v19
  %39 = vmatprep.subr.mxu0 0.0
  %40 = vmatpush1.msra.mxu0 %v20
  %41 = vmatprep.subr.mxu0 0.0
  %42 = vmatpush1.msra.mxu0 %v21
  %43 = vmatprep.subr.mxu0 0.0
  %44 = vmatpush1.msra.mxu0 %v22
  %45 = vmatprep.subr.mxu0 0.0
  %46 = vmatpush1.msra.mxu0 0.0
  %47 = vmatprep.subr.mxu0 0.0
  %48 = vmatpush1.msra.mxu0 0.0
  %49 = vmatprep.subr.mxu0 0.0
  %50 = vmatpush1.msra.mxu0 0.0
  %51 = vmatprep.subr.mxu0 0.0
  %52 = vmatpush1.msra.mxu0 0.0
  %53 = vmatprep.subr.mxu0 0.0
  %54 = vmatpush1.msra.mxu0 0.0
  %55 = vmatprep.subr.mxu0 0.0
  %56 = vmatpush1.msra.mxu0 0.0
  %57 = vmatprep.subr.mxu0 0.0
  %58 = vmatpush1.msra.mxu0 0.0
  %59 = vmatprep.subr.mxu0 0.0
  %60 = vmatpush1.msra.mxu0 0.0
  %61 = vmatprep.subr.mxu0 0.0
  %62 = vmatpush1.msra.mxu0 0.0
  %63 = vmatprep.subr.mxu0 0.0
  %64 = vmatpush1.msra.mxu0 0.0
  %65 = vmatprep.subr.mxu0 0.0
  %66 = vmatpush1.msra.mxu0 0.0
  %67 = vmatprep.subr.mxu0 0.0
  %68 = vmatpush1.msra.mxu0 0.0
  %69 = vmatprep.subr.mxu0 0.0
  %70 = vmatpush1.msra.mxu0 0.0
  %71 = vmatprep.subr.mxu0 0.0
  %72 = vmatpush1.msra.mxu0 0.0
  %73 = vmatprep.subr.mxu0 0.0
  %74 = vmatpush1.msra.mxu0 0.0
  %75 = vmatprep.subr.mxu0 0.0
  %76 = vmatpush1.msra.mxu0 0.0
  %77 = vmatprep.subr.mxu0 0.0
  %78 = vmatpush1.msra.mxu0 0.0
  %79 = vmatprep.subr.mxu0 0.0
  %80 = vmatpush1.msra.mxu0 0.0
  %81 = vmatprep.subr.mxu0 0.0
  %82 = vmatpush1.msra.mxu0 0.0
  %83 = vmatprep.subr.mxu0 0.0
  %84 = vmatpush1.msra.mxu0 0.0
  %85 = vmatprep.subr.mxu0 0.0
  %86 = vmatpush1.msra.mxu0 0.0
  %87 = vmatprep.subr.mxu0 0.0
  %88 = vmatpush1.msra.mxu0 0.0
  %89 = vmatprep.subr.mxu0 0.0
  %90 = vmatpush1.msra.mxu0 0.0
  %91 = vmatprep.subr.mxu0 0.0
  %92 = vmatpush1.msra.mxu0 0.0
  %93 = vmatprep.subr.mxu0 0.0
  %94 = vmatpush1.msra.mxu0 0.0
  %95 = vmatprep.subr.mxu0 0.0
  %96 = vmatpush1.msra.mxu0 0.0
  %97 = vmatprep.subr.mxu0 0.0
  %98 = vmatpush1.msra.mxu0 0.0
  %99 = vmatprep.subr.mxu0 0.0
  %100 = vmatpush1.msra.mxu0 0.0
  %101 = vmatprep.mubr.f32.mxu0 0.0
  %102 = vmatmul.mubr.f32.gmra.mrb[0].mxu0 %v32
  %v103 = vpop.f32.mrb[0].mxu0
  %v104 = vadd.f32 %v28, %v103
  %v105 = vpop.f32.mrb[0].mxu0
  %106 = vmatprep.mubr.f32.mxu0 0.0
  %107 = vmatmul.mubr.f32.gmra.mrb[0].mxu0 %v35
  %v108 = vpop.f32.mrb[0].mxu0
  %v109 = vadd.f32 %v28, %v108
  %v110 = vpop.f32.mrb[0].mxu0
  %111 = vdwg.mxu0
  %v112 = vld [vmem:[%s3] sm:$0xff]
  %v113 = vld [vmem:[%s3 + $0x8] sm:$0xff]
  %v114 = vmax.f32 %v104, 0.0
  %v115 = vmax.f32 %v109, 0.0
  %v116 = vand.u32 2147483647, %v104
  %v117 = vand.u32 2147483647, %v109
  %v118 = vsub.f32 0.0, %v116
  %v119 = vsub.f32 0.0, %v117
  %v120 = vmul.f32 %v118, 1.442695
  %v121 = vpow.pop %v120
  %v122 = vmul.f32 %v119, 1.442695
  %v123 = vpow.pop %v122
  %v124 = vadd.f32 %v121, 1.0
  %v125 = vlog2.pop %v124
  %v126 = vmul.f32 %v125, 0.6931472
  %v127 = vmul.f32 -0.5, %v121
  %v128 = vadd.f32 %v127, 1.0
  %v129 = vmul.f32 %v128, %v121
  %v130 = vand.u32 2147483647, %v121
  %vm131 = vcmp.lt.f32.partialorder %v130, 0.0004427343
  %v132 = vsel %vm131, %v129, %v126
  %v133 = vadd.f32 %v123, 1.0
  %v134 = vlog2.pop %v133
  %v135 = vmul.f32 %v134, 0.6931472
  %v136 = vmul.f32 -0.5, %v123
  %v137 = vadd.f32 %v136, 1.0
  %v138 = vmul.f32 %v137, %v123
  %v139 = vand.u32 2147483647, %v123
  %vm140 = vcmp.lt.f32.partialorder %v139, 0.0004427343
  %v141 = vsel %vm140, %v138, %v135
  %v142 = vadd.f32 %v114, %v132
  %v143 = vadd.f32 %v115, %v141
  %146 = vrot.lane.b32.xlu0 %v142, 120
  %v147 = vpop.permute.xlu0 %146
  %148 = vrot.lane.b32.xlu0 %v143, 120
  %v149 = vpop.permute.xlu0 %148
  %v152 = vmul.f32 %v112, %v147
  %v153 = vmul.f32 %v113, %v149
  %v154 = vadd.f32 %v104, %v152
  %v155 = vadd.f32 %v109, %v153
  %v156 = vlaneseq
  %v157 = vand.u32 %v156, 127
  %vm158 = vcmask 64512
  %v159 = vsel %vm158, %v154, -inf
  %160 = vmax.xlane.f32.xlu0 %v159
  %v161 = vpop.xlane.xlu0 %160
  %v162 = vsel %vm158, %v155, -inf
  %163 = vmax.xlane.f32.xlu0 %v162
  %v164 = vpop.xlane.xlu0 %163
  %vm165 = vcmp.eq.f32.partialorder %v154, %v161
  %vm166 = vcmp.eq.f32.partialorder %v155, %v164
  %v167 = vsel %vm165, %v157, 8
  %v168 = vsel %vm166, %v157, 8
  %v169 = vsel %vm158, %v167, 2147483647
  %v170 = vand.u32 %v169, 65535
  %v171 = vshra.s32 %v169, 16
  %v172 = vcvt.s32.f32 %v170
  %v173 = vcvt.s32.f32 %v171
  %174 = vmin.xlane.f32.xlu0 %v173
  %v175 = vpop.xlane.xlu0 %174
  %vm176 = vcmp.eq.f32.partialorder %v173, %v175
  %v177 = vsel %vm176, %v172, inf
  %178 = vmin.xlane.f32.xlu0 %v177
  %v179 = vpop.xlane.xlu0 %178
  %v180 = vcvt.f32.s32 %v179
  %v181 = vcvt.f32.s32 %v175
  %v182 = vshll.u32 %v181, 16
  %v183 = vadd.s32 %v182, %v180
  %v184 = vsel %vm158, %v168, 2147483647
  %v185 = vand.u32 %v184, 65535
  %v186 = vshra.s32 %v184, 16
  %v187 = vcvt.s32.f32 %v185
  %v188 = vcvt.s32.f32 %v186
  %189 = vmin.xlane.f32.xlu0 %v188
  %v190 = vpop.xlane.xlu0 %189
  %vm191 = vcmp.eq.f32.partialorder %v188, %v190
  %v192 = vsel %vm191, %v187, inf
  %193 = vmin.xlane.f32.xlu0 %v192
  %v194 = vpop.xlane.xlu0 %193
  %v195 = vcvt.f32.s32 %v194
  %v196 = vcvt.f32.s32 %v190
  %v197 = vshll.u32 %v196, 16
  %v198 = vadd.s32 %v197, %v195
  %vm199 = vcmp.eq.s32.totalorder %v157, %v183
  %vm200 = vcmp.eq.s32.totalorder %v157, %v198
  %v201 = vsel %vm199, -inf, %v154
  %v202 = vsel %vm200, -inf, %v155
  %v203 = vsel %vm158, %v201, -inf
  %204 = vmax.xlane.f32.xlu0 %v203
  %v205 = vpop.xlane.xlu0 %204
  %v206 = vsel %vm158, %v202, -inf
  %207 = vmax.xlane.f32.xlu0 %v206
  %v208 = vpop.xlane.xlu0 %207
  %vm209 = vcmp.eq.f32.partialorder %v201, %v205
  %vm210 = vcmp.eq.f32.partialorder %v202, %v208
  %v211 = vsel %vm209, %v157, 8
  %v212 = vsel %vm210, %v157, 8
  %v213 = vsel %vm158, %v211, 2147483647
  %v214 = vand.u32 %v213, 65535
  %v215 = vshra.s32 %v213, 16
  %v216 = vcvt.s32.f32 %v214
  %v217 = vcvt.s32.f32 %v215
  %218 = vmin.xlane.f32.xlu0 %v217
  %v219 = vpop.xlane.xlu0 %218
  %vm220 = vcmp.eq.f32.partialorder %v217, %v219
  %v221 = vsel %vm220, %v216, inf
  %222 = vmin.xlane.f32.xlu0 %v221
  %v223 = vpop.xlane.xlu0 %222
  %v224 = vcvt.f32.s32 %v223
  %v225 = vcvt.f32.s32 %v219
  %v226 = vshll.u32 %v225, 16
  %v227 = vadd.s32 %v226, %v224
  %v228 = vsel %vm158, %v212, 2147483647
  %v229 = vand.u32 %v228, 65535
  %v230 = vshra.s32 %v228, 16
  %v231 = vcvt.s32.f32 %v229
  %v232 = vcvt.s32.f32 %v230
  %233 = vmin.xlane.f32.xlu0 %v232
  %v234 = vpop.xlane.xlu0 %233
  %vm235 = vcmp.eq.f32.partialorder %v232, %v234
  %v236 = vsel %vm235, %v231, inf
  %237 = vmin.xlane.f32.xlu0 %v236
  %v238 = vpop.xlane.xlu0 %237
  %v239 = vcvt.f32.s32 %v238
  %v240 = vcvt.f32.s32 %v234
  %v241 = vshll.u32 %v240, 16
  %v242 = vadd.s32 %v241, %v239
  %vm243 = vcmp.eq.s32.totalorder %v157, %v227
  %vm244 = vcmp.eq.s32.totalorder %v157, %v242
  %vm245 = vmor %vm199, %vm243
  %vm246 = vmor %vm200, %vm244
  %v247 = vsel %vm245, %v154, -inf
  %v248 = vsel %vm246, %v155, -inf
  %v249 = vsel %vm158, %v247, -inf
  %250 = vmax.xlane.f32.xlu0 %v249
  %v251 = vpop.xlane.xlu0 %250
  %v252 = vsel %vm158, %v248, -inf
  %253 = vmax.xlane.f32.xlu0 %v252
  %v254 = vpop.xlane.xlu0 %253
  %v255 = vsub.f32 %v247, %v251
  %v256 = vsub.f32 %v248, %v254
  %v257 = vmul.f32 %v255, 1.442695
  %v258 = vpow.pop %v257
  %v259 = vmul.f32 %v256, 1.442695
  %v260 = vpow.pop %v259
  %v261 = vsel %vm158, %v258, 0.0
  %262 = vadd.xlane.f32.xlu0 %v261
  %v263 = vpop.xlane.xlu0 %262
  %v264 = vsel %vm158, %v260, 0.0
  %265 = vadd.xlane.f32.xlu0 %v264
  %v266 = vpop.xlane.xlu0 %265
  %v267 = vrcp.pop %v263
  %v268 = vmul.f32 %v258, %v267
  %v269 = vrcp.pop %v266
  %v270 = vmul.f32 %v260, %v269
  %271 = vst.msk [vmem:[%s4] sm:$0xff] %vm158, %v268
  %272 = vst.msk [vmem:[%s4 + $0x8] sm:$0xff] %vm158, %v270
  // Predicated region
  $region18: #{tpu_custom_call.1} parent=0 // pred_check
    _
  $region19: #{tpu_custom_call.1} parent=0 // pred_check_branch
    %274 = sbr.rel (0) target = $region21
  $region20: #{tpu_custom_call.1} parent=0 // pred_region
    _
  $region21: #{tpu_custom_call.1} parent=0 // pred_fallthru
    _
  // Predicated region
  $region22: #{tpu_custom_call.1} parent=0 // pred_check
    _
  $region23: #{tpu_custom_call.1} parent=0 // pred_check_branch
    %276 = sbr.rel (0) target = $region25
  $region24: #{tpu_custom_call.1} parent=0 // pred_region
    _
  $region25: #{tpu_custom_call.1} parent=0 // pred_fallthru
    _

</llo_original>
